<compile_context>
chip_gen: v7x
topology: tpu7x:2x2x1
jax: 0.10.0
libtpu: 0.0.40
codegen_flags: <defaults>
</compile_context>

<pallas_src>
import jax
import jax.numpy as jnp
from jax.experimental import pallas as pl
from jax.experimental.pallas import tpu as pltpu


# Packed-parameter offsets (PyTorch (out, in) weight layout, row-major flattened).
#   w1: (4,6) @ [ 0:24)   b1: (4,) @ [24:28)
#   w2: (2,4) @ [28:36)   b2: (2,) @ [36:38)
#   w3: (4,2) @ [38:46)   b3: (4,) @ [46:50)
#   w4: (6,4) @ [50:74)   b4: (6,) @ [74:80)
_W1, _B1 = 0, 24
_W2, _B2 = 28, 36
_W3, _B3 = 38, 46
_W4, _B4 = 50, 74
_NUM_PARAMS = 80

_LANE = 128   # vreg lane width
_SUB = 8      # vreg sublane count (f32)


def _autoencoder_kernel(p_ref, x_ref, o_ref):
    """One batch tile.

    p_ref: (80,) f32 packed params in SMEM (scalar reads -> scalar-broadcast FMAs).
    x_ref: (6, ts, tl) f32 in VMEM; per-feature plane x_ref[f] is a full-vreg tile.
    o_ref: (6, ts, tl) f32 in VMEM, same layout (lane-dense, unmasked stores).
    """
    # One full-vreg activation plane per input feature: each is (ts, tl).
    planes = [x_ref[i] for i in range(6)]

    def dense(h_in, w_off, b_off, n_in, n_out, act):
        """h_out[j] = act(sum_i W[j, i] * h_in[i] + b[j]), W in (out, in) layout.

        Fully unrolled at trace time: <= 6 scalar*vector FMAs per output plane,
        all on the VPU (no MXU/XLU involvement)."""
        h_out = []
        for j in range(n_out):
            acc = h_in[0] * p_ref[w_off + j * n_in]
            for i in range(1, n_in):
                acc = acc + h_in[i] * p_ref[w_off + j * n_in + i]
            acc = acc + p_ref[b_off + j]
            h_out.append(act(acc))
        return h_out

    relu = lambda v: jnp.maximum(v, 0.0)

    h = dense(planes, _W1, _B1, 6, 4, relu)            # encoder Linear(6,4) + ReLU
    h = dense(h,      _W2, _B2, 4, 2, relu)            # encoder Linear(4,2) + ReLU
    h = dense(h,      _W3, _B3, 2, 4, relu)            # decoder Linear(2,4) + ReLU
    y = dense(h,      _W4, _B4, 4, 6, jax.nn.sigmoid)  # decoder Linear(4,6) + Sigmoid

    for j in range(6):
        o_ref[j] = y[j]


def _round_up(n, m):
    return ((n + m - 1) // m) * m


def pack_params(params):
    """Flatten the PyTorch-layout (out, in) weights + (out,) biases into one f32[80]."""
    packed = jnp.concatenate([
        params["w1"].reshape(-1), params["b1"],
        params["w2"].reshape(-1), params["b2"],
        params["w3"].reshape(-1), params["b3"],
        params["w4"].reshape(-1), params["b4"],
    ]).astype(jnp.float32)
    assert packed.shape == (_NUM_PARAMS,)
    return packed


def autoencoder_forward(x, params, *, tile_s=_SUB, tile_l=None):
    """x: (B, 6) float32. params: dict of PyTorch-layout (out,in) weights / (out,) biases."""
    B, f_in = x.shape
    assert f_in == 6
    assert tile_s % _SUB == 0, "tile_s must be a multiple of 8 (sublane count)"

    if tile_l is None:
        # Lane-dense tile: large enough to amortize the ~0.35 us per-grid-step
        # overhead, small enough that double-buffered in+out tiles stay well inside
        # the scoped-VMEM default on every generation (v5e 16 MiB, v6e/v7x 32 MiB).
        tile_l = max(_LANE, min(8192, _round_up(pl.cdiv(B, tile_s), _LANE)))
    assert tile_l % _LANE == 0, "tile_l must be a multiple of 128 (lane width)"

    samples_per_tile = tile_s * tile_l
    b_padded = _round_up(B, samples_per_tile)

    # Feature-major, then batch split across (sublane, lane): (6, B) -> (6, S, L).
    # The transpose is wrapper-side layout plumbing; the reshape is free (row-major).
    xt = jnp.transpose(x).astype(jnp.float32)          # (6, B)
    if b_padded != B:
        xt = jnp.pad(xt, ((0, 0), (0, b_padded - B)))  # padded cols computed on zeros
    x3 = xt.reshape(6, b_padded // tile_l, tile_l)

    packed = pack_params(params)                       # (80,) f32 -> SMEM

    grid = (b_padded // samples_per_tile,)
    cost = pl.CostEstimate(
        flops=2 * B * (6 * 4 + 4 * 2 + 2 * 4 + 4 * 6),
        transcendentals=B * 6,                         # sigmoid exp per output element
        bytes_accessed=2 * B * 6 * 4 + _NUM_PARAMS * 4,
    )

    out3 = pl.pallas_call(
        _autoencoder_kernel,
        out_shape=jax.ShapeDtypeStruct((6, b_padded // tile_l, tile_l), jnp.float32),
        grid_spec=pltpu.PrefetchScalarGridSpec(
            num_scalar_prefetch=0,
            grid=grid,
            in_specs=[
                # All 80 params live in SMEM for the whole kernel (single tiny copy,
                # no per-tensor padded VMEM tiles / pipeline channels).
                pl.BlockSpec(memory_space=pltpu.MemorySpace.SMEM),
                # Batch tile: sublane axis tiled by the grid, lane axis full/lane-dense.
                pl.BlockSpec((6, tile_s, tile_l), lambda i: (0, i, 0)),
            ],
            out_specs=pl.BlockSpec((6, tile_s, tile_l), lambda i: (0, i, 0)),
        ),
        compiler_params=pltpu.CompilerParams(
            dimension_semantics=("parallel",)),        # megacore-shard batch tiles
        cost_estimate=cost,
    )(packed, x3)

    out = out3.reshape(6, b_padded)[:, :B]
    return jnp.transpose(out)                          # back to (B, 6)


def init_params(key):
    """Deterministic init mimicking PyTorch nn.Linear default:
    W, b ~ U(-1/sqrt(fan_in), 1/sqrt(fan_in)). Weights kept in PyTorch (out, in) layout."""
    dims = [(6, 4), (4, 2), (2, 4), (4, 6)]            # (fan_in, fan_out)
    params = {}
    for idx, (fan_in, fan_out) in enumerate(dims, start=1):
        key, kw, kb = jax.random.split(key, 3)
        bound = 1.0 / jnp.sqrt(float(fan_in))
        params[f"w{idx}"] = jax.random.uniform(
            kw, (fan_out, fan_in), jnp.float32, minval=-bound, maxval=bound)
        params[f"b{idx}"] = jax.random.uniform(
            kb, (fan_out,), jnp.float32, minval=-bound, maxval=bound)
    return params


def reference_forward(x, p):
    hi = jax.lax.Precision.HIGHEST
    h = jnp.maximum(jnp.dot(x, p["w1"].T, precision=hi) + p["b1"], 0.0)
    h = jnp.maximum(jnp.dot(h, p["w2"].T, precision=hi) + p["b2"], 0.0)
    h = jnp.maximum(jnp.dot(h, p["w3"].T, precision=hi) + p["b3"], 0.0)
    return jax.nn.sigmoid(jnp.dot(h, p["w4"].T, precision=hi) + p["b4"])


if __name__ == "__main__":
    key = jax.random.PRNGKey(0)
    kx, kp, kx2 = jax.random.split(key, 3)
    params = init_params(kp)

    # Small demo batch (single tile, default tiling).
    B = 8
    x = jax.random.normal(kx, (B, 6), dtype=jnp.float32)
    out = jax.block_until_ready(autoencoder_forward(x, params))
    ref = reference_forward(x, params)
    assert out.shape == (B, 6)
    assert jnp.allclose(out, ref, atol=1e-5, rtol=1e-5), "mismatch vs JAX reference (B=8)"

    # Multi-tile grid + remainder-padding path (forced small tiles -> 3 grid steps).
    B2 = 2600
    x2 = jax.random.normal(kx2, (B2, 6), dtype=jnp.float32)
    out2 = jax.block_until_ready(
        autoencoder_forward(x2, params, tile_s=8, tile_l=128))
    ref2 = reference_forward(x2, params)
    assert out2.shape == (B2, 6)
    assert jnp.allclose(out2, ref2, atol=1e-5, rtol=1e-5), "mismatch vs JAX reference (B=2600)"

    print("KERNEL_OK")
</pallas_src>

<mosaic_0001>
module attributes {stable_mosaic.version = 11 : i64} {
  func.func @_autoencoder_kernel(%arg0: i32, %arg1: memref<80xf32, #tpu.memory_space<smem>>, %arg2: memref<6x8x128xf32, #tpu.memory_space<vmem>>, %arg3: memref<6x8x128xf32, #tpu.memory_space<vmem>>) attributes {dimension_semantics = [#tpu.dimension_semantics<parallel>], iteration_bounds = array<i64: 1>, scalar_prefetch = 0 : i64, scratch_operands = 0 : i64, tpu.core_type = #tpu.core_type<tc>, window_params = [{transform_indices = @transform_0, window_bounds = array<i64: 80>}, {transform_indices = @transform_1, window_bounds = array<i64: 6, 8, 128>}, {transform_indices = @transform_2, window_bounds = array<i64: 6, 8, 128>}]} {
    %c0 = arith.constant 0 : index
    %c0_0 = arith.constant 0 : index
    %c0_1 = arith.constant 0 : index
    %0 = vector.load %arg2[%c0, %c0_0, %c0_1] : memref<6x8x128xf32, #tpu.memory_space<vmem>>, vector<1x8x128xf32>
    %1 = vector.shape_cast %0 : vector<1x8x128xf32> to vector<8x128xf32>
    %c1 = arith.constant 1 : index
    %c0_2 = arith.constant 0 : index
    %c0_3 = arith.constant 0 : index
    %2 = vector.load %arg2[%c1, %c0_2, %c0_3] : memref<6x8x128xf32, #tpu.memory_space<vmem>>, vector<1x8x128xf32>
    %3 = vector.shape_cast %2 : vector<1x8x128xf32> to vector<8x128xf32>
    %c2 = arith.constant 2 : index
    %c0_4 = arith.constant 0 : index
    %c0_5 = arith.constant 0 : index
    %4 = vector.load %arg2[%c2, %c0_4, %c0_5] : memref<6x8x128xf32, #tpu.memory_space<vmem>>, vector<1x8x128xf32>
    %5 = vector.shape_cast %4 : vector<1x8x128xf32> to vector<8x128xf32>
    %c3 = arith.constant 3 : index
    %c0_6 = arith.constant 0 : index
    %c0_7 = arith.constant 0 : index
    %6 = vector.load %arg2[%c3, %c0_6, %c0_7] : memref<6x8x128xf32, #tpu.memory_space<vmem>>, vector<1x8x128xf32>
    %7 = vector.shape_cast %6 : vector<1x8x128xf32> to vector<8x128xf32>
    %c4 = arith.constant 4 : index
    %c0_8 = arith.constant 0 : index
    %c0_9 = arith.constant 0 : index
    %8 = vector.load %arg2[%c4, %c0_8, %c0_9] : memref<6x8x128xf32, #tpu.memory_space<vmem>>, vector<1x8x128xf32>
    %9 = vector.shape_cast %8 : vector<1x8x128xf32> to vector<8x128xf32>
    %c5 = arith.constant 5 : index
    %c0_10 = arith.constant 0 : index
    %c0_11 = arith.constant 0 : index
    %10 = vector.load %arg2[%c5, %c0_10, %c0_11] : memref<6x8x128xf32, #tpu.memory_space<vmem>>, vector<1x8x128xf32>
    %11 = vector.shape_cast %10 : vector<1x8x128xf32> to vector<8x128xf32>
    %c0_12 = arith.constant 0 : index
    %12 = memref.load %arg1[%c0_12] : memref<80xf32, #tpu.memory_space<smem>>
    %13 = vector.broadcast %12 : f32 to vector<8x128xf32>
    %14 = arith.mulf %1, %13 : vector<8x128xf32>
    %c1_13 = arith.constant 1 : index
    %15 = memref.load %arg1[%c1_13] : memref<80xf32, #tpu.memory_space<smem>>
    %16 = vector.broadcast %15 : f32 to vector<8x128xf32>
    %17 = arith.mulf %3, %16 : vector<8x128xf32>
    %18 = arith.addf %14, %17 : vector<8x128xf32>
    %c2_14 = arith.constant 2 : index
    %19 = memref.load %arg1[%c2_14] : memref<80xf32, #tpu.memory_space<smem>>
    %20 = vector.broadcast %19 : f32 to vector<8x128xf32>
    %21 = arith.mulf %5, %20 : vector<8x128xf32>
    %22 = arith.addf %18, %21 : vector<8x128xf32>
    %c3_15 = arith.constant 3 : index
    %23 = memref.load %arg1[%c3_15] : memref<80xf32, #tpu.memory_space<smem>>
    %24 = vector.broadcast %23 : f32 to vector<8x128xf32>
    %25 = arith.mulf %7, %24 : vector<8x128xf32>
    %26 = arith.addf %22, %25 : vector<8x128xf32>
    %c4_16 = arith.constant 4 : index
    %27 = memref.load %arg1[%c4_16] : memref<80xf32, #tpu.memory_space<smem>>
    %28 = vector.broadcast %27 : f32 to vector<8x128xf32>
    %29 = arith.mulf %9, %28 : vector<8x128xf32>
    %30 = arith.addf %26, %29 : vector<8x128xf32>
    %c5_17 = arith.constant 5 : index
    %31 = memref.load %arg1[%c5_17] : memref<80xf32, #tpu.memory_space<smem>>
    %32 = vector.broadcast %31 : f32 to vector<8x128xf32>
    %33 = arith.mulf %11, %32 : vector<8x128xf32>
    %34 = arith.addf %30, %33 : vector<8x128xf32>
    %c24 = arith.constant 24 : index
    %35 = memref.load %arg1[%c24] : memref<80xf32, #tpu.memory_space<smem>>
    %36 = vector.broadcast %35 : f32 to vector<8x128xf32>
    %37 = arith.addf %34, %36 : vector<8x128xf32>
    %cst = arith.constant 0.000000e+00 : f32
    %38 = vector.broadcast %cst : f32 to vector<8x128xf32>
    %39 = arith.maximumf %37, %38 : vector<8x128xf32>
    %c6 = arith.constant 6 : index
    %40 = memref.load %arg1[%c6] : memref<80xf32, #tpu.memory_space<smem>>
    %41 = vector.broadcast %40 : f32 to vector<8x128xf32>
    %42 = arith.mulf %1, %41 : vector<8x128xf32>
    %c7 = arith.constant 7 : index
    %43 = memref.load %arg1[%c7] : memref<80xf32, #tpu.memory_space<smem>>
    %44 = vector.broadcast %43 : f32 to vector<8x128xf32>
    %45 = arith.mulf %3, %44 : vector<8x128xf32>
    %46 = arith.addf %42, %45 : vector<8x128xf32>
    %c8 = arith.constant 8 : index
    %47 = memref.load %arg1[%c8] : memref<80xf32, #tpu.memory_space<smem>>
    %48 = vector.broadcast %47 : f32 to vector<8x128xf32>
    %49 = arith.mulf %5, %48 : vector<8x128xf32>
    %50 = arith.addf %46, %49 : vector<8x128xf32>
    %c9 = arith.constant 9 : index
    %51 = memref.load %arg1[%c9] : memref<80xf32, #tpu.memory_space<smem>>
    %52 = vector.broadcast %51 : f32 to vector<8x128xf32>
    %53 = arith.mulf %7, %52 : vector<8x128xf32>
    %54 = arith.addf %50, %53 : vector<8x128xf32>
    %c10 = arith.constant 10 : index
    %55 = memref.load %arg1[%c10] : memref<80xf32, #tpu.memory_space<smem>>
    %56 = vector.broadcast %55 : f32 to vector<8x128xf32>
    %57 = arith.mulf %9, %56 : vector<8x128xf32>
    %58 = arith.addf %54, %57 : vector<8x128xf32>
    %c11 = arith.constant 11 : index
    %59 = memref.load %arg1[%c11] : memref<80xf32, #tpu.memory_space<smem>>
    %60 = vector.broadcast %59 : f32 to vector<8x128xf32>
    %61 = arith.mulf %11, %60 : vector<8x128xf32>
    %62 = arith.addf %58, %61 : vector<8x128xf32>
    %c25 = arith.constant 25 : index
    %63 = memref.load %arg1[%c25] : memref<80xf32, #tpu.memory_space<smem>>
    %64 = vector.broadcast %63 : f32 to vector<8x128xf32>
    %65 = arith.addf %62, %64 : vector<8x128xf32>
    %cst_18 = arith.constant 0.000000e+00 : f32
    %66 = vector.broadcast %cst_18 : f32 to vector<8x128xf32>
    %67 = arith.maximumf %65, %66 : vector<8x128xf32>
    %c12 = arith.constant 12 : index
    %68 = memref.load %arg1[%c12] : memref<80xf32, #tpu.memory_space<smem>>
    %69 = vector.broadcast %68 : f32 to vector<8x128xf32>
    %70 = arith.mulf %1, %69 : vector<8x128xf32>
    %c13 = arith.constant 13 : index
    %71 = memref.load %arg1[%c13] : memref<80xf32, #tpu.memory_space<smem>>
    %72 = vector.broadcast %71 : f32 to vector<8x128xf32>
    %73 = arith.mulf %3, %72 : vector<8x128xf32>
    %74 = arith.addf %70, %73 : vector<8x128xf32>
    %c14 = arith.constant 14 : index
    %75 = memref.load %arg1[%c14] : memref<80xf32, #tpu.memory_space<smem>>
    %76 = vector.broadcast %75 : f32 to vector<8x128xf32>
    %77 = arith.mulf %5, %76 : vector<8x128xf32>
    %78 = arith.addf %74, %77 : vector<8x128xf32>
    %c15 = arith.constant 15 : index
    %79 = memref.load %arg1[%c15] : memref<80xf32, #tpu.memory_space<smem>>
    %80 = vector.broadcast %79 : f32 to vector<8x128xf32>
    %81 = arith.mulf %7, %80 : vector<8x128xf32>
    %82 = arith.addf %78, %81 : vector<8x128xf32>
    %c16 = arith.constant 16 : index
    %83 = memref.load %arg1[%c16] : memref<80xf32, #tpu.memory_space<smem>>
    %84 = vector.broadcast %83 : f32 to vector<8x128xf32>
    %85 = arith.mulf %9, %84 : vector<8x128xf32>
    %86 = arith.addf %82, %85 : vector<8x128xf32>
    %c17 = arith.constant 17 : index
    %87 = memref.load %arg1[%c17] : memref<80xf32, #tpu.memory_space<smem>>
    %88 = vector.broadcast %87 : f32 to vector<8x128xf32>
    %89 = arith.mulf %11, %88 : vector<8x128xf32>
    %90 = arith.addf %86, %89 : vector<8x128xf32>
    %c26 = arith.constant 26 : index
    %91 = memref.load %arg1[%c26] : memref<80xf32, #tpu.memory_space<smem>>
    %92 = vector.broadcast %91 : f32 to vector<8x128xf32>
    %93 = arith.addf %90, %92 : vector<8x128xf32>
    %cst_19 = arith.constant 0.000000e+00 : f32
    %94 = vector.broadcast %cst_19 : f32 to vector<8x128xf32>
    %95 = arith.maximumf %93, %94 : vector<8x128xf32>
    %c18 = arith.constant 18 : index
    %96 = memref.load %arg1[%c18] : memref<80xf32, #tpu.memory_space<smem>>
    %97 = vector.broadcast %96 : f32 to vector<8x128xf32>
    %98 = arith.mulf %1, %97 : vector<8x128xf32>
    %c19 = arith.constant 19 : index
    %99 = memref.load %arg1[%c19] : memref<80xf32, #tpu.memory_space<smem>>
    %100 = vector.broadcast %99 : f32 to vector<8x128xf32>
    %101 = arith.mulf %3, %100 : vector<8x128xf32>
    %102 = arith.addf %98, %101 : vector<8x128xf32>
    %c20 = arith.constant 20 : index
    %103 = memref.load %arg1[%c20] : memref<80xf32, #tpu.memory_space<smem>>
    %104 = vector.broadcast %103 : f32 to vector<8x128xf32>
    %105 = arith.mulf %5, %104 : vector<8x128xf32>
    %106 = arith.addf %102, %105 : vector<8x128xf32>
    %c21 = arith.constant 21 : index
    %107 = memref.load %arg1[%c21] : memref<80xf32, #tpu.memory_space<smem>>
    %108 = vector.broadcast %107 : f32 to vector<8x128xf32>
    %109 = arith.mulf %7, %108 : vector<8x128xf32>
    %110 = arith.addf %106, %109 : vector<8x128xf32>
    %c22 = arith.constant 22 : index
    %111 = memref.load %arg1[%c22] : memref<80xf32, #tpu.memory_space<smem>>
    %112 = vector.broadcast %111 : f32 to vector<8x128xf32>
    %113 = arith.mulf %9, %112 : vector<8x128xf32>
    %114 = arith.addf %110, %113 : vector<8x128xf32>
    %c23 = arith.constant 23 : index
    %115 = memref.load %arg1[%c23] : memref<80xf32, #tpu.memory_space<smem>>
    %116 = vector.broadcast %115 : f32 to vector<8x128xf32>
    %117 = arith.mulf %11, %116 : vector<8x128xf32>
    %118 = arith.addf %114, %117 : vector<8x128xf32>
    %c27 = arith.constant 27 : index
    %119 = memref.load %arg1[%c27] : memref<80xf32, #tpu.memory_space<smem>>
    %120 = vector.broadcast %119 : f32 to vector<8x128xf32>
    %121 = arith.addf %118, %120 : vector<8x128xf32>
    %cst_20 = arith.constant 0.000000e+00 : f32
    %122 = vector.broadcast %cst_20 : f32 to vector<8x128xf32>
    %123 = arith.maximumf %121, %122 : vector<8x128xf32>
    %c28 = arith.constant 28 : index
    %124 = memref.load %arg1[%c28] : memref<80xf32, #tpu.memory_space<smem>>
    %125 = vector.broadcast %124 : f32 to vector<8x128xf32>
    %126 = arith.mulf %39, %125 : vector<8x128xf32>
    %c29 = arith.constant 29 : index
    %127 = memref.load %arg1[%c29] : memref<80xf32, #tpu.memory_space<smem>>
    %128 = vector.broadcast %127 : f32 to vector<8x128xf32>
    %129 = arith.mulf %67, %128 : vector<8x128xf32>
    %130 = arith.addf %126, %129 : vector<8x128xf32>
    %c30 = arith.constant 30 : index
    %131 = memref.load %arg1[%c30] : memref<80xf32, #tpu.memory_space<smem>>
    %132 = vector.broadcast %131 : f32 to vector<8x128xf32>
    %133 = arith.mulf %95, %132 : vector<8x128xf32>
    %134 = arith.addf %130, %133 : vector<8x128xf32>
    %c31 = arith.constant 31 : index
    %135 = memref.load %arg1[%c31] : memref<80xf32, #tpu.memory_space<smem>>
    %136 = vector.broadcast %135 : f32 to vector<8x128xf32>
    %137 = arith.mulf %123, %136 : vector<8x128xf32>
    %138 = arith.addf %134, %137 : vector<8x128xf32>
    %c36 = arith.constant 36 : index
    %139 = memref.load %arg1[%c36] : memref<80xf32, #tpu.memory_space<smem>>
    %140 = vector.broadcast %139 : f32 to vector<8x128xf32>
    %141 = arith.addf %138, %140 : vector<8x128xf32>
    %cst_21 = arith.constant 0.000000e+00 : f32
    %142 = vector.broadcast %cst_21 : f32 to vector<8x128xf32>
    %143 = arith.maximumf %141, %142 : vector<8x128xf32>
    %c32 = arith.constant 32 : index
    %144 = memref.load %arg1[%c32] : memref<80xf32, #tpu.memory_space<smem>>
    %145 = vector.broadcast %144 : f32 to vector<8x128xf32>
    %146 = arith.mulf %39, %145 : vector<8x128xf32>
    %c33 = arith.constant 33 : index
    %147 = memref.load %arg1[%c33] : memref<80xf32, #tpu.memory_space<smem>>
    %148 = vector.broadcast %147 : f32 to vector<8x128xf32>
    %149 = arith.mulf %67, %148 : vector<8x128xf32>
    %150 = arith.addf %146, %149 : vector<8x128xf32>
    %c34 = arith.constant 34 : index
    %151 = memref.load %arg1[%c34] : memref<80xf32, #tpu.memory_space<smem>>
    %152 = vector.broadcast %151 : f32 to vector<8x128xf32>
    %153 = arith.mulf %95, %152 : vector<8x128xf32>
    %154 = arith.addf %150, %153 : vector<8x128xf32>
    %c35 = arith.constant 35 : index
    %155 = memref.load %arg1[%c35] : memref<80xf32, #tpu.memory_space<smem>>
    %156 = vector.broadcast %155 : f32 to vector<8x128xf32>
    %157 = arith.mulf %123, %156 : vector<8x128xf32>
    %158 = arith.addf %154, %157 : vector<8x128xf32>
    %c37 = arith.constant 37 : index
    %159 = memref.load %arg1[%c37] : memref<80xf32, #tpu.memory_space<smem>>
    %160 = vector.broadcast %159 : f32 to vector<8x128xf32>
    %161 = arith.addf %158, %160 : vector<8x128xf32>
    %cst_22 = arith.constant 0.000000e+00 : f32
    %162 = vector.broadcast %cst_22 : f32 to vector<8x128xf32>
    %163 = arith.maximumf %161, %162 : vector<8x128xf32>
    %c38 = arith.constant 38 : index
    %164 = memref.load %arg1[%c38] : memref<80xf32, #tpu.memory_space<smem>>
    %165 = vector.broadcast %164 : f32 to vector<8x128xf32>
    %166 = arith.mulf %143, %165 : vector<8x128xf32>
    %c39 = arith.constant 39 : index
    %167 = memref.load %arg1[%c39] : memref<80xf32, #tpu.memory_space<smem>>
    %168 = vector.broadcast %167 : f32 to vector<8x128xf32>
    %169 = arith.mulf %163, %168 : vector<8x128xf32>
    %170 = arith.addf %166, %169 : vector<8x128xf32>
    %c46 = arith.constant 46 : index
    %171 = memref.load %arg1[%c46] : memref<80xf32, #tpu.memory_space<smem>>
    %172 = vector.broadcast %171 : f32 to vector<8x128xf32>
    %173 = arith.addf %170, %172 : vector<8x128xf32>
    %cst_23 = arith.constant 0.000000e+00 : f32
    %174 = vector.broadcast %cst_23 : f32 to vector<8x128xf32>
    %175 = arith.maximumf %173, %174 : vector<8x128xf32>
    %c40 = arith.constant 40 : index
    %176 = memref.load %arg1[%c40] : memref<80xf32, #tpu.memory_space<smem>>
    %177 = vector.broadcast %176 : f32 to vector<8x128xf32>
    %178 = arith.mulf %143, %177 : vector<8x128xf32>
    %c41 = arith.constant 41 : index
    %179 = memref.load %arg1[%c41] : memref<80xf32, #tpu.memory_space<smem>>
    %180 = vector.broadcast %179 : f32 to vector<8x128xf32>
    %181 = arith.mulf %163, %180 : vector<8x128xf32>
    %182 = arith.addf %178, %181 : vector<8x128xf32>
    %c47 = arith.constant 47 : index
    %183 = memref.load %arg1[%c47] : memref<80xf32, #tpu.memory_space<smem>>
    %184 = vector.broadcast %183 : f32 to vector<8x128xf32>
    %185 = arith.addf %182, %184 : vector<8x128xf32>
    %cst_24 = arith.constant 0.000000e+00 : f32
    %186 = vector.broadcast %cst_24 : f32 to vector<8x128xf32>
    %187 = arith.maximumf %185, %186 : vector<8x128xf32>
    %c42 = arith.constant 42 : index
    %188 = memref.load %arg1[%c42] : memref<80xf32, #tpu.memory_space<smem>>
    %189 = vector.broadcast %188 : f32 to vector<8x128xf32>
    %190 = arith.mulf %143, %189 : vector<8x128xf32>
    %c43 = arith.constant 43 : index
    %191 = memref.load %arg1[%c43] : memref<80xf32, #tpu.memory_space<smem>>
    %192 = vector.broadcast %191 : f32 to vector<8x128xf32>
    %193 = arith.mulf %163, %192 : vector<8x128xf32>
    %194 = arith.addf %190, %193 : vector<8x128xf32>
    %c48 = arith.constant 48 : index
    %195 = memref.load %arg1[%c48] : memref<80xf32, #tpu.memory_space<smem>>
    %196 = vector.broadcast %195 : f32 to vector<8x128xf32>
    %197 = arith.addf %194, %196 : vector<8x128xf32>
    %cst_25 = arith.constant 0.000000e+00 : f32
    %198 = vector.broadcast %cst_25 : f32 to vector<8x128xf32>
    %199 = arith.maximumf %197, %198 : vector<8x128xf32>
    %c44 = arith.constant 44 : index
    %200 = memref.load %arg1[%c44] : memref<80xf32, #tpu.memory_space<smem>>
    %201 = vector.broadcast %200 : f32 to vector<8x128xf32>
    %202 = arith.mulf %143, %201 : vector<8x128xf32>
    %c45 = arith.constant 45 : index
    %203 = memref.load %arg1[%c45] : memref<80xf32, #tpu.memory_space<smem>>
    %204 = vector.broadcast %203 : f32 to vector<8x128xf32>
    %205 = arith.mulf %163, %204 : vector<8x128xf32>
    %206 = arith.addf %202, %205 : vector<8x128xf32>
    %c49 = arith.constant 49 : index
    %207 = memref.load %arg1[%c49] : memref<80xf32, #tpu.memory_space<smem>>
    %208 = vector.broadcast %207 : f32 to vector<8x128xf32>
    %209 = arith.addf %206, %208 : vector<8x128xf32>
    %cst_26 = arith.constant 0.000000e+00 : f32
    %210 = vector.broadcast %cst_26 : f32 to vector<8x128xf32>
    %211 = arith.maximumf %209, %210 : vector<8x128xf32>
    %c50 = arith.constant 50 : index
    %212 = memref.load %arg1[%c50] : memref<80xf32, #tpu.memory_space<smem>>
    %213 = vector.broadcast %212 : f32 to vector<8x128xf32>
    %214 = arith.mulf %175, %213 : vector<8x128xf32>
    %c51 = arith.constant 51 : index
    %215 = memref.load %arg1[%c51] : memref<80xf32, #tpu.memory_space<smem>>
    %216 = vector.broadcast %215 : f32 to vector<8x128xf32>
    %217 = arith.mulf %187, %216 : vector<8x128xf32>
    %218 = arith.addf %214, %217 : vector<8x128xf32>
    %c52 = arith.constant 52 : index
    %219 = memref.load %arg1[%c52] : memref<80xf32, #tpu.memory_space<smem>>
    %220 = vector.broadcast %219 : f32 to vector<8x128xf32>
    %221 = arith.mulf %199, %220 : vector<8x128xf32>
    %222 = arith.addf %218, %221 : vector<8x128xf32>
    %c53 = arith.constant 53 : index
    %223 = memref.load %arg1[%c53] : memref<80xf32, #tpu.memory_space<smem>>
    %224 = vector.broadcast %223 : f32 to vector<8x128xf32>
    %225 = arith.mulf %211, %224 : vector<8x128xf32>
    %226 = arith.addf %222, %225 : vector<8x128xf32>
    %c74 = arith.constant 74 : index
    %227 = memref.load %arg1[%c74] : memref<80xf32, #tpu.memory_space<smem>>
    %228 = vector.broadcast %227 : f32 to vector<8x128xf32>
    %229 = arith.addf %226, %228 : vector<8x128xf32>
    %230 = arith.negf %229 : vector<8x128xf32>
    %231 = math.exp %230 : vector<8x128xf32>
    %cst_27 = arith.constant 1.000000e+00 : f32
    %232 = vector.broadcast %cst_27 : f32 to vector<8x128xf32>
    %233 = arith.addf %232, %231 : vector<8x128xf32>
    %234 = arith.divf %232, %233 : vector<8x128xf32>
    %c54 = arith.constant 54 : index
    %235 = memref.load %arg1[%c54] : memref<80xf32, #tpu.memory_space<smem>>
    %236 = vector.broadcast %235 : f32 to vector<8x128xf32>
    %237 = arith.mulf %175, %236 : vector<8x128xf32>
    %c55 = arith.constant 55 : index
    %238 = memref.load %arg1[%c55] : memref<80xf32, #tpu.memory_space<smem>>
    %239 = vector.broadcast %238 : f32 to vector<8x128xf32>
    %240 = arith.mulf %187, %239 : vector<8x128xf32>
    %241 = arith.addf %237, %240 : vector<8x128xf32>
    %c56 = arith.constant 56 : index
    %242 = memref.load %arg1[%c56] : memref<80xf32, #tpu.memory_space<smem>>
    %243 = vector.broadcast %242 : f32 to vector<8x128xf32>
    %244 = arith.mulf %199, %243 : vector<8x128xf32>
    %245 = arith.addf %241, %244 : vector<8x128xf32>
    %c57 = arith.constant 57 : index
    %246 = memref.load %arg1[%c57] : memref<80xf32, #tpu.memory_space<smem>>
    %247 = vector.broadcast %246 : f32 to vector<8x128xf32>
    %248 = arith.mulf %211, %247 : vector<8x128xf32>
    %249 = arith.addf %245, %248 : vector<8x128xf32>
    %c75 = arith.constant 75 : index
    %250 = memref.load %arg1[%c75] : memref<80xf32, #tpu.memory_space<smem>>
    %251 = vector.broadcast %250 : f32 to vector<8x128xf32>
    %252 = arith.addf %249, %251 : vector<8x128xf32>
    %253 = arith.negf %252 : vector<8x128xf32>
    %254 = math.exp %253 : vector<8x128xf32>
    %cst_28 = arith.constant 1.000000e+00 : f32
    %255 = vector.broadcast %cst_28 : f32 to vector<8x128xf32>
    %256 = arith.addf %255, %254 : vector<8x128xf32>
    %257 = arith.divf %255, %256 : vector<8x128xf32>
    %c58 = arith.constant 58 : index
    %258 = memref.load %arg1[%c58] : memref<80xf32, #tpu.memory_space<smem>>
    %259 = vector.broadcast %258 : f32 to vector<8x128xf32>
    %260 = arith.mulf %175, %259 : vector<8x128xf32>
    %c59 = arith.constant 59 : index
    %261 = memref.load %arg1[%c59] : memref<80xf32, #tpu.memory_space<smem>>
    %262 = vector.broadcast %261 : f32 to vector<8x128xf32>
    %263 = arith.mulf %187, %262 : vector<8x128xf32>
    %264 = arith.addf %260, %263 : vector<8x128xf32>
    %c60 = arith.constant 60 : index
    %265 = memref.load %arg1[%c60] : memref<80xf32, #tpu.memory_space<smem>>
    %266 = vector.broadcast %265 : f32 to vector<8x128xf32>
    %267 = arith.mulf %199, %266 : vector<8x128xf32>
    %268 = arith.addf %264, %267 : vector<8x128xf32>
    %c61 = arith.constant 61 : index
    %269 = memref.load %arg1[%c61] : memref<80xf32, #tpu.memory_space<smem>>
    %270 = vector.broadcast %269 : f32 to vector<8x128xf32>
    %271 = arith.mulf %211, %270 : vector<8x128xf32>
    %272 = arith.addf %268, %271 : vector<8x128xf32>
    %c76 = arith.constant 76 : index
    %273 = memref.load %arg1[%c76] : memref<80xf32, #tpu.memory_space<smem>>
    %274 = vector.broadcast %273 : f32 to vector<8x128xf32>
    %275 = arith.addf %272, %274 : vector<8x128xf32>
    %276 = arith.negf %275 : vector<8x128xf32>
    %277 = math.exp %276 : vector<8x128xf32>
    %cst_29 = arith.constant 1.000000e+00 : f32
    %278 = vector.broadcast %cst_29 : f32 to vector<8x128xf32>
    %279 = arith.addf %278, %277 : vector<8x128xf32>
    %280 = arith.divf %278, %279 : vector<8x128xf32>
    %c62 = arith.constant 62 : index
    %281 = memref.load %arg1[%c62] : memref<80xf32, #tpu.memory_space<smem>>
    %282 = vector.broadcast %281 : f32 to vector<8x128xf32>
    %283 = arith.mulf %175, %282 : vector<8x128xf32>
    %c63 = arith.constant 63 : index
    %284 = memref.load %arg1[%c63] : memref<80xf32, #tpu.memory_space<smem>>
    %285 = vector.broadcast %284 : f32 to vector<8x128xf32>
    %286 = arith.mulf %187, %285 : vector<8x128xf32>
    %287 = arith.addf %283, %286 : vector<8x128xf32>
    %c64 = arith.constant 64 : index
    %288 = memref.load %arg1[%c64] : memref<80xf32, #tpu.memory_space<smem>>
    %289 = vector.broadcast %288 : f32 to vector<8x128xf32>
    %290 = arith.mulf %199, %289 : vector<8x128xf32>
    %291 = arith.addf %287, %290 : vector<8x128xf32>
    %c65 = arith.constant 65 : index
    %292 = memref.load %arg1[%c65] : memref<80xf32, #tpu.memory_space<smem>>
    %293 = vector.broadcast %292 : f32 to vector<8x128xf32>
    %294 = arith.mulf %211, %293 : vector<8x128xf32>
    %295 = arith.addf %291, %294 : vector<8x128xf32>
    %c77 = arith.constant 77 : index
    %296 = memref.load %arg1[%c77] : memref<80xf32, #tpu.memory_space<smem>>
    %297 = vector.broadcast %296 : f32 to vector<8x128xf32>
    %298 = arith.addf %295, %297 : vector<8x128xf32>
    %299 = arith.negf %298 : vector<8x128xf32>
    %300 = math.exp %299 : vector<8x128xf32>
    %cst_30 = arith.constant 1.000000e+00 : f32
    %301 = vector.broadcast %cst_30 : f32 to vector<8x128xf32>
    %302 = arith.addf %301, %300 : vector<8x128xf32>
    %303 = arith.divf %301, %302 : vector<8x128xf32>
    %c66 = arith.constant 66 : index
    %304 = memref.load %arg1[%c66] : memref<80xf32, #tpu.memory_space<smem>>
    %305 = vector.broadcast %304 : f32 to vector<8x128xf32>
    %306 = arith.mulf %175, %305 : vector<8x128xf32>
    %c67 = arith.constant 67 : index
    %307 = memref.load %arg1[%c67] : memref<80xf32, #tpu.memory_space<smem>>
    %308 = vector.broadcast %307 : f32 to vector<8x128xf32>
    %309 = arith.mulf %187, %308 : vector<8x128xf32>
    %310 = arith.addf %306, %309 : vector<8x128xf32>
    %c68 = arith.constant 68 : index
    %311 = memref.load %arg1[%c68] : memref<80xf32, #tpu.memory_space<smem>>
    %312 = vector.broadcast %311 : f32 to vector<8x128xf32>
    %313 = arith.mulf %199, %312 : vector<8x128xf32>
    %314 = arith.addf %310, %313 : vector<8x128xf32>
    %c69 = arith.constant 69 : index
    %315 = memref.load %arg1[%c69] : memref<80xf32, #tpu.memory_space<smem>>
    %316 = vector.broadcast %315 : f32 to vector<8x128xf32>
    %317 = arith.mulf %211, %316 : vector<8x128xf32>
    %318 = arith.addf %314, %317 : vector<8x128xf32>
    %c78 = arith.constant 78 : index
    %319 = memref.load %arg1[%c78] : memref<80xf32, #tpu.memory_space<smem>>
    %320 = vector.broadcast %319 : f32 to vector<8x128xf32>
    %321 = arith.addf %318, %320 : vector<8x128xf32>
    %322 = arith.negf %321 : vector<8x128xf32>
    %323 = math.exp %322 : vector<8x128xf32>
    %cst_31 = arith.constant 1.000000e+00 : f32
    %324 = vector.broadcast %cst_31 : f32 to vector<8x128xf32>
    %325 = arith.addf %324, %323 : vector<8x128xf32>
    %326 = arith.divf %324, %325 : vector<8x128xf32>
    %c70 = arith.constant 70 : index
    %327 = memref.load %arg1[%c70] : memref<80xf32, #tpu.memory_space<smem>>
    %328 = vector.broadcast %327 : f32 to vector<8x128xf32>
    %329 = arith.mulf %175, %328 : vector<8x128xf32>
    %c71 = arith.constant 71 : index
    %330 = memref.load %arg1[%c71] : memref<80xf32, #tpu.memory_space<smem>>
    %331 = vector.broadcast %330 : f32 to vector<8x128xf32>
    %332 = arith.mulf %187, %331 : vector<8x128xf32>
    %333 = arith.addf %329, %332 : vector<8x128xf32>
    %c72 = arith.constant 72 : index
    %334 = memref.load %arg1[%c72] : memref<80xf32, #tpu.memory_space<smem>>
    %335 = vector.broadcast %334 : f32 to vector<8x128xf32>
    %336 = arith.mulf %199, %335 : vector<8x128xf32>
    %337 = arith.addf %333, %336 : vector<8x128xf32>
    %c73 = arith.constant 73 : index
    %338 = memref.load %arg1[%c73] : memref<80xf32, #tpu.memory_space<smem>>
    %339 = vector.broadcast %338 : f32 to vector<8x128xf32>
    %340 = arith.mulf %211, %339 : vector<8x128xf32>
    %341 = arith.addf %337, %340 : vector<8x128xf32>
    %c79 = arith.constant 79 : index
    %342 = memref.load %arg1[%c79] : memref<80xf32, #tpu.memory_space<smem>>
    %343 = vector.broadcast %342 : f32 to vector<8x128xf32>
    %344 = arith.addf %341, %343 : vector<8x128xf32>
    %345 = arith.negf %344 : vector<8x128xf32>
    %346 = math.exp %345 : vector<8x128xf32>
    %cst_32 = arith.constant 1.000000e+00 : f32
    %347 = vector.broadcast %cst_32 : f32 to vector<8x128xf32>
    %348 = arith.addf %347, %346 : vector<8x128xf32>
    %349 = arith.divf %347, %348 : vector<8x128xf32>
    %c0_33 = arith.constant 0 : index
    %c0_34 = arith.constant 0 : index
    %c0_35 = arith.constant 0 : index
    %350 = vector.load %arg3[%c0_33, %c0_34, %c0_35] : memref<6x8x128xf32, #tpu.memory_space<vmem>>, vector<1x8x128xf32>
    %351 = vector.shape_cast %350 : vector<1x8x128xf32> to vector<8x128xf32>
    %352 = vector.shape_cast %234 : vector<8x128xf32> to vector<1x8x128xf32>
    tpu.vector_store %arg3[%c0_33, %c0_34, %c0_35], %352 {strides = array<i32>} : memref<6x8x128xf32, #tpu.memory_space<vmem>>, vector<1x8x128xf32>,
    %c1_36 = arith.constant 1 : index
    %c0_37 = arith.constant 0 : index
    %c0_38 = arith.constant 0 : index
    %353 = vector.load %arg3[%c1_36, %c0_37, %c0_38] : memref<6x8x128xf32, #tpu.memory_space<vmem>>, vector<1x8x128xf32>
    %354 = vector.shape_cast %353 : vector<1x8x128xf32> to vector<8x128xf32>
    %355 = vector.shape_cast %257 : vector<8x128xf32> to vector<1x8x128xf32>
    tpu.vector_store %arg3[%c1_36, %c0_37, %c0_38], %355 {strides = array<i32>} : memref<6x8x128xf32, #tpu.memory_space<vmem>>, vector<1x8x128xf32>,
    %c2_39 = arith.constant 2 : index
    %c0_40 = arith.constant 0 : index
    %c0_41 = arith.constant 0 : index
    %356 = vector.load %arg3[%c2_39, %c0_40, %c0_41] : memref<6x8x128xf32, #tpu.memory_space<vmem>>, vector<1x8x128xf32>
    %357 = vector.shape_cast %356 : vector<1x8x128xf32> to vector<8x128xf32>
    %358 = vector.shape_cast %280 : vector<8x128xf32> to vector<1x8x128xf32>
    tpu.vector_store %arg3[%c2_39, %c0_40, %c0_41], %358 {strides = array<i32>} : memref<6x8x128xf32, #tpu.memory_space<vmem>>, vector<1x8x128xf32>,
    %c3_42 = arith.constant 3 : index
    %c0_43 = arith.constant 0 : index
    %c0_44 = arith.constant 0 : index
    %359 = vector.load %arg3[%c3_42, %c0_43, %c0_44] : memref<6x8x128xf32, #tpu.memory_space<vmem>>, vector<1x8x128xf32>
    %360 = vector.shape_cast %359 : vector<1x8x128xf32> to vector<8x128xf32>
    %361 = vector.shape_cast %303 : vector<8x128xf32> to vector<1x8x128xf32>
    tpu.vector_store %arg3[%c3_42, %c0_43, %c0_44], %361 {strides = array<i32>} : memref<6x8x128xf32, #tpu.memory_space<vmem>>, vector<1x8x128xf32>,
    %c4_45 = arith.constant 4 : index
    %c0_46 = arith.constant 0 : index
    %c0_47 = arith.constant 0 : index
    %362 = vector.load %arg3[%c4_45, %c0_46, %c0_47] : memref<6x8x128xf32, #tpu.memory_space<vmem>>, vector<1x8x128xf32>
    %363 = vector.shape_cast %362 : vector<1x8x128xf32> to vector<8x128xf32>
    %364 = vector.shape_cast %326 : vector<8x128xf32> to vector<1x8x128xf32>
    tpu.vector_store %arg3[%c4_45, %c0_46, %c0_47], %364 {strides = array<i32>} : memref<6x8x128xf32, #tpu.memory_space<vmem>>, vector<1x8x128xf32>,
    %c5_48 = arith.constant 5 : index
    %c0_49 = arith.constant 0 : index
    %c0_50 = arith.constant 0 : index
    %365 = vector.load %arg3[%c5_48, %c0_49, %c0_50] : memref<6x8x128xf32, #tpu.memory_space<vmem>>, vector<1x8x128xf32>
    %366 = vector.shape_cast %365 : vector<1x8x128xf32> to vector<8x128xf32>
    %367 = vector.shape_cast %349 : vector<8x128xf32> to vector<1x8x128xf32>
    tpu.vector_store %arg3[%c5_48, %c0_49, %c0_50], %367 {strides = array<i32>} : memref<6x8x128xf32, #tpu.memory_space<vmem>>, vector<1x8x128xf32>,
    return
  }
  func.func @transform_0(%arg0: i32) -> i32 {
    %c0_i32 = arith.constant 0 : i32
    %c0_i32_0 = arith.constant 0 : i32
    return %c0_i32 : i32
  }
  func.func @transform_1(%arg0: i32) -> (i32, i32, i32) {
    %c0_i32 = arith.constant 0 : i32
    %c0_i32_0 = arith.constant 0 : i32
    %c0_i32_1 = arith.constant 0 : i32
    return %c0_i32, %arg0, %c0_i32_0 : i32, i32, i32
  }
  func.func @transform_2(%arg0: i32) -> (i32, i32, i32) {
    %c0_i32 = arith.constant 0 : i32
    %c0_i32_0 = arith.constant 0 : i32
    %c0_i32_1 = arith.constant 0 : i32
    return %c0_i32, %arg0, %c0_i32_0 : i32, i32, i32
  }
}

</mosaic_0001>

<llo_original>
// kernel: tpu_custom_call.1
$region0: #{tpu_custom_call.1}
  #allocation0 [shape = 'u32[]', space=smem, size = 0x4, offset = 0x4, fixed_abs, tag = 'smem constant byte address 0x4 - core index']
  #allocation1 [shape = 'u32[144,128]{1,0:T(1,128)}', space=vmem, size = 0x12000, scoped, tag = 'internal scratch']
  %s0 = inlined_call_operand.hbm [shape: f32[80], index: 0, kind: input, shape index: {}]
  %s1 = inlined_call_operand.hbm [shape: f32[6,8,128], index: 1, kind: input, shape index: {}]
  %s2 = inlined_call_operand.hbm [shape: f32[6,8,128], index: 2, kind: output, shape index: {}]
  %s3 = sld [smem:[#allocation0]]
  $region26: #{tpu_custom_call.1} parent=0
    _
  %s5 = ssub.s32 1, %s3
  %s6 = scalar_select 0, %s5, %s3
  $region1: #{tpu_custom_call.1} parent=0
    #allocation2 [shape = 'u8[512]{0}', space=smem, size = 0x200, scoped, tag = 'input window, operand 0, single buffered']
    #allocation3 [shape = 's32[1]{0}', space=sflag, size = 0x4, scoped, tag = 'scoped memory for tpu_custom_call.1']
    #allocation4 [shape = 's32[1]{0}', space=sflag, size = 0x4, scoped, tag = 'scoped memory for tpu_custom_call.1']
    #allocation5 [shape = 's32[1]{0}', space=sflag, size = 0x4, scoped, tag = 'scoped memory for tpu_custom_call.1']
    #allocation6 [shape = 'u8[24576]{0}', space=vmem, size = 0x6000, scoped, tag = 'input window, operand 1, single buffered']
    #allocation7 [shape = 'u8[24576]{0}', space=vmem, size = 0x6000, scoped, tag = 'output window, operand 0, single buffered']
    %7 = vsyncpa [#allocation5], 0
    %8 = vsyncpa [#allocation3], 0
    %9 = vsyncpa [#allocation4], 0
    // Predicated region
    $region2: #{tpu_custom_call.1} parent=1 // pred_check
      _
    $region3: #{tpu_custom_call.1} parent=1 // pred_check_branch
      %11 = sbr.rel (0) target = $region5
    $region4: #{tpu_custom_call.1} parent=1 // pred_region
      %s13 = ssub.s32 16, 16
      %14 = vsyncadd [#allocation5], %s13
      %17 = dma.hbm_to_smem %s0, 16, [#allocation2], [#allocation5]
    $region5: #{tpu_custom_call.1} parent=1 // pred_fallthru
      _
    // Predicated region
    $region6: #{tpu_custom_call.1} parent=1 // pred_check
      _
    $region7: #{tpu_custom_call.1} parent=1 // pred_check_branch
      %19 = sbr.rel (0) target = $region9
    $region8: #{tpu_custom_call.1} parent=1 // pred_region
      %s21 = ssub.s32 768, 768
      %22 = vsyncadd [#allocation3], %s21
      %s23 = sshll.u32 [#allocation6], 4
      %s24 = int_to_ptr.vmem [resolvable:$true] %s23
      %29 = dma.hbm_to_vmem [thread:$0]  %s1, 768, %s24, [#allocation3], 128, 128, 8
    $region9: #{tpu_custom_call.1} parent=1 // pred_fallthru
      _
    // Predicated region
    $region10: #{tpu_custom_call.1} parent=1 // pred_check
      _
    $region11: #{tpu_custom_call.1} parent=1 // pred_check_branch
      %31 = sbr.rel (0) target = $region13
    $region12: #{tpu_custom_call.1} parent=1 // pred_region
      %32 = dma.done [#allocation5], 16
    $region13: #{tpu_custom_call.1} parent=1 // pred_fallthru
      _
    // Predicated region
    $region14: #{tpu_custom_call.1} parent=1 // pred_check
      _
    $region15: #{tpu_custom_call.1} parent=1 // pred_check_branch
      %34 = sbr.rel (0) target = $region17
    $region16: #{tpu_custom_call.1} parent=1 // pred_region
      %35 = dma.done [#allocation3], 768
    $region17: #{tpu_custom_call.1} parent=1 // pred_fallthru
      _
    %36 = sfence
    %v37 = vld [vmem:[#allocation6] sm:$0xff]
    %s38 = scalar_lea.vmem [#allocation6], 8
    %v39 = vld [vmem:[%s38] sm:$0xff]
    %s40 = scalar_lea.vmem [#allocation6], 16
    %v41 = vld [vmem:[%s40] sm:$0xff]
    %s42 = scalar_lea.vmem [#allocation6], 24
    %v43 = vld [vmem:[%s42] sm:$0xff]
    %s44 = scalar_lea.vmem [#allocation6], 32
    %v45 = vld [vmem:[%s44] sm:$0xff]
    %s46 = scalar_lea.vmem [#allocation6], 40
    %v47 = vld [vmem:[%s46] sm:$0xff]
    %s48 = sld [smem:[#allocation2]]
    %v49 = vstv %s48
    %v50 = vmul.f32 %v37, %v49
    %s51 = sld [smem:[#allocation2 + $0x1]]
    %v52 = vstv %s51
    %v53 = vmul.f32 %v39, %v52
    %v54 = vadd.f32 %v50, %v53
    %s55 = sld [smem:[#allocation2 + $0x2]]
    %v56 = vstv %s55
    %v57 = vmul.f32 %v41, %v56
    %v58 = vadd.f32 %v54, %v57
    %s59 = sld [smem:[#allocation2 + $0x3]]
    %v60 = vstv %s59
    %v61 = vmul.f32 %v43, %v60
    %v62 = vadd.f32 %v58, %v61
    %s63 = sld [smem:[#allocation2 + $0x4]]
    %v64 = vstv %s63
    %v65 = vmul.f32 %v45, %v64
    %v66 = vadd.f32 %v62, %v65
    %s67 = sld [smem:[#allocation2 + $0x5]]
    %v68 = vstv %s67
    %v69 = vmul.f32 %v47, %v68
    %v70 = vadd.f32 %v66, %v69
    %s71 = sld [smem:[#allocation2 + $0x18]]
    %v72 = vstv %s71
    %v73 = vadd.f32 %v70, %v72
    %v74 = vmax.f32 %v73, 0.0
    %s75 = sld [smem:[#allocation2 + $0x6]]
    %v76 = vstv %s75
    %v77 = vmul.f32 %v37, %v76
    %s78 = sld [smem:[#allocation2 + $0x7]]
    %v79 = vstv %s78
    %v80 = vmul.f32 %v39, %v79
    %v81 = vadd.f32 %v77, %v80
    %s82 = sld [smem:[#allocation2 + $0x8]]
    %v83 = vstv %s82
    %v84 = vmul.f32 %v41, %v83
    %v85 = vadd.f32 %v81, %v84
    %s86 = sld [smem:[#allocation2 + $0x9]]
    %v87 = vstv %s86
    %v88 = vmul.f32 %v43, %v87
    %v89 = vadd.f32 %v85, %v88
    %s90 = sld [smem:[#allocation2 + $0xa]]
    %v91 = vstv %s90
    %v92 = vmul.f32 %v45, %v91
    %v93 = vadd.f32 %v89, %v92
    %s94 = sld [smem:[#allocation2 + $0xb]]
    %v95 = vstv %s94
    %v96 = vmul.f32 %v47, %v95
    %v97 = vadd.f32 %v93, %v96
    %s98 = sld [smem:[#allocation2 + $0x19]]
    %v99 = vstv %s98
    %v100 = vadd.f32 %v97, %v99
    %v101 = vmax.f32 %v100, 0.0
    %s102 = sld [smem:[#allocation2 + $0xc]]
    %v103 = vstv %s102
    %v104 = vmul.f32 %v37, %v103
    %s105 = sld [smem:[#allocation2 + $0xd]]
    %v106 = vstv %s105
    %v107 = vmul.f32 %v39, %v106
    %v108 = vadd.f32 %v104, %v107
    %s109 = sld [smem:[#allocation2 + $0xe]]
    %v110 = vstv %s109
    %v111 = vmul.f32 %v41, %v110
    %v112 = vadd.f32 %v108, %v111
    %s113 = sld [smem:[#allocation2 + $0xf]]
    %v114 = vstv %s113
    %v115 = vmul.f32 %v43, %v114
    %v116 = vadd.f32 %v112, %v115
    %s117 = sld [smem:[#allocation2 + $0x10]]
    %v118 = vstv %s117
    %v119 = vmul.f32 %v45, %v118
    %v120 = vadd.f32 %v116, %v119
    %s121 = sld [smem:[#allocation2 + $0x11]]
    %v122 = vstv %s121
    %v123 = vmul.f32 %v47, %v122
    %v124 = vadd.f32 %v120, %v123
    %s125 = sld [smem:[#allocation2 + $0x1a]]
    %v126 = vstv %s125
    %v127 = vadd.f32 %v124, %v126
    %v128 = vmax.f32 %v127, 0.0
    %s129 = sld [smem:[#allocation2 + $0x12]]
    %v130 = vstv %s129
    %v131 = vmul.f32 %v37, %v130
    %s132 = sld [smem:[#allocation2 + $0x13]]
    %v133 = vstv %s132
    %v134 = vmul.f32 %v39, %v133
    %v135 = vadd.f32 %v131, %v134
    %s136 = sld [smem:[#allocation2 + $0x14]]
    %v137 = vstv %s136
    %v138 = vmul.f32 %v41, %v137
    %v139 = vadd.f32 %v135, %v138
    %s140 = sld [smem:[#allocation2 + $0x15]]
    %v141 = vstv %s140
    %v142 = vmul.f32 %v43, %v141
    %v143 = vadd.f32 %v139, %v142
    %s144 = sld [smem:[#allocation2 + $0x16]]
    %v145 = vstv %s144
    %v146 = vmul.f32 %v45, %v145
    %v147 = vadd.f32 %v143, %v146
    %s148 = sld [smem:[#allocation2 + $0x17]]
    %v149 = vstv %s148
    %v150 = vmul.f32 %v47, %v149
    %v151 = vadd.f32 %v147, %v150
    %s152 = sld [smem:[#allocation2 + $0x1b]]
    %v153 = vstv %s152
    %v154 = vadd.f32 %v151, %v153
    %v155 = vmax.f32 %v154, 0.0
    %s156 = sld [smem:[#allocation2 + $0x1c]]
    %v157 = vstv %s156
    %v158 = vmul.f32 %v74, %v157
    %s159 = sld [smem:[#allocation2 + $0x1d]]
    %v160 = vstv %s159
    %v161 = vmul.f32 %v101, %v160
    %v162 = vadd.f32 %v158, %v161
    %s163 = sld [smem:[#allocation2 + $0x1e]]
    %v164 = vstv %s163
    %v165 = vmul.f32 %v128, %v164
    %v166 = vadd.f32 %v162, %v165
    %s167 = sld [smem:[#allocation2 + $0x1f]]
    %v168 = vstv %s167
    %v169 = vmul.f32 %v155, %v168
    %v170 = vadd.f32 %v166, %v169
    %s171 = sld [smem:[#allocation2 + $0x24]]
    %v172 = vstv %s171
    %v173 = vadd.f32 %v170, %v172
    %v174 = vmax.f32 %v173, 0.0
    %s175 = sld [smem:[#allocation2 + $0x20]]
    %v176 = vstv %s175
    %v177 = vmul.f32 %v74, %v176
    %s178 = sld [smem:[#allocation2 + $0x21]]
    %v179 = vstv %s178
    %v180 = vmul.f32 %v101, %v179
    %v181 = vadd.f32 %v177, %v180
    %s182 = sld [smem:[#allocation2 + $0x22]]
    %v183 = vstv %s182
    %v184 = vmul.f32 %v128, %v183
    %v185 = vadd.f32 %v181, %v184
    %s186 = sld [smem:[#allocation2 + $0x23]]
    %v187 = vstv %s186
    %v188 = vmul.f32 %v155, %v187
    %v189 = vadd.f32 %v185, %v188
    %s190 = sld [smem:[#allocation2 + $0x25]]
    %v191 = vstv %s190
    %v192 = vadd.f32 %v189, %v191
    %v193 = vmax.f32 %v192, 0.0
    %s194 = sld [smem:[#allocation2 + $0x26]]
    %v195 = vstv %s194
    %v196 = vmul.f32 %v174, %v195
    %s197 = sld [smem:[#allocation2 + $0x27]]
    %v198 = vstv %s197
    %v199 = vmul.f32 %v193, %v198
    %v200 = vadd.f32 %v196, %v199
    %s201 = sld [smem:[#allocation2 + $0x2e]]
    %v202 = vstv %s201
    %v203 = vadd.f32 %v200, %v202
    %v204 = vmax.f32 %v203, 0.0
    %s205 = sld [smem:[#allocation2 + $0x28]]
    %v206 = vstv %s205
    %v207 = vmul.f32 %v174, %v206
    %s208 = sld [smem:[#allocation2 + $0x29]]
    %v209 = vstv %s208
    %v210 = vmul.f32 %v193, %v209
    %v211 = vadd.f32 %v207, %v210
    %s212 = sld [smem:[#allocation2 + $0x2f]]
    %v213 = vstv %s212
    %v214 = vadd.f32 %v211, %v213
    %v215 = vmax.f32 %v214, 0.0
    %s216 = sld [smem:[#allocation2 + $0x2a]]
    %v217 = vstv %s216
    %v218 = vmul.f32 %v174, %v217
    %s219 = sld [smem:[#allocation2 + $0x2b]]
    %v220 = vstv %s219
    %v221 = vmul.f32 %v193, %v220
    %v222 = vadd.f32 %v218, %v221
    %s223 = sld [smem:[#allocation2 + $0x30]]
    %v224 = vstv %s223
    %v225 = vadd.f32 %v222, %v224
    %v226 = vmax.f32 %v225, 0.0
    %s227 = sld [smem:[#allocation2 + $0x2c]]
    %v228 = vstv %s227
    %v229 = vmul.f32 %v174, %v228
    %s230 = sld [smem:[#allocation2 + $0x2d]]
    %v231 = vstv %s230
    %v232 = vmul.f32 %v193, %v231
    %v233 = vadd.f32 %v229, %v232
    %s234 = sld [smem:[#allocation2 + $0x31]]
    %v235 = vstv %s234
    %v236 = vadd.f32 %v233, %v235
    %v237 = vmax.f32 %v236, 0.0
    %s238 = sld [smem:[#allocation2 + $0x32]]
    %v239 = vstv %s238
    %v240 = vmul.f32 %v204, %v239
    %s241 = sld [smem:[#allocation2 + $0x33]]
    %v242 = vstv %s241
    %v243 = vmul.f32 %v215, %v242
    %v244 = vadd.f32 %v240, %v243
    %s245 = sld [smem:[#allocation2 + $0x34]]
    %v246 = vstv %s245
    %v247 = vmul.f32 %v226, %v246
    %v248 = vadd.f32 %v244, %v247
    %s249 = sld [smem:[#allocation2 + $0x35]]
    %v250 = vstv %s249
    %v251 = vmul.f32 %v237, %v250
    %v252 = vadd.f32 %v248, %v251
    %s253 = sld [smem:[#allocation2 + $0x4a]]
    %v254 = vstv %s253
    %v255 = vadd.f32 %v252, %v254
    %v256 = vxor.u32 %v255, 2147483648
    %v257 = vmul.f32 %v256, 1.442695
    %v258 = vpow.pop %v257
    %v259 = vadd.f32 %v258, 1.0
    %v260 = vrcp.pop %v259
    %v261 = vmul.f32 1.0, %v260
    %s262 = sld [smem:[#allocation2 + $0x36]]
    %v263 = vstv %s262
    %v264 = vmul.f32 %v204, %v263
    %s265 = sld [smem:[#allocation2 + $0x37]]
    %v266 = vstv %s265
    %v267 = vmul.f32 %v215, %v266
    %v268 = vadd.f32 %v264, %v267
    %s269 = sld [smem:[#allocation2 + $0x38]]
    %v270 = vstv %s269
    %v271 = vmul.f32 %v226, %v270
    %v272 = vadd.f32 %v268, %v271
    %s273 = sld [smem:[#allocation2 + $0x39]]
    %v274 = vstv %s273
    %v275 = vmul.f32 %v237, %v274
    %v276 = vadd.f32 %v272, %v275
    %s277 = sld [smem:[#allocation2 + $0x4b]]
    %v278 = vstv %s277
    %v279 = vadd.f32 %v276, %v278
    %v280 = vxor.u32 %v279, 2147483648
    %v281 = vmul.f32 %v280, 1.442695
    %v282 = vpow.pop %v281
    %v283 = vadd.f32 %v282, 1.0
    %v284 = vrcp.pop %v283
    %v285 = vmul.f32 1.0, %v284
    %s286 = sld [smem:[#allocation2 + $0x3a]]
    %v287 = vstv %s286
    %v288 = vmul.f32 %v204, %v287
    %s289 = sld [smem:[#allocation2 + $0x3b]]
    %v290 = vstv %s289
    %v291 = vmul.f32 %v215, %v290
    %v292 = vadd.f32 %v288, %v291
    %s293 = sld [smem:[#allocation2 + $0x3c]]
    %v294 = vstv %s293
    %v295 = vmul.f32 %v226, %v294
    %v296 = vadd.f32 %v292, %v295
    %s297 = sld [smem:[#allocation2 + $0x3d]]
    %v298 = vstv %s297
    %v299 = vmul.f32 %v237, %v298
    %v300 = vadd.f32 %v296, %v299
    %s301 = sld [smem:[#allocation2 + $0x4c]]
    %v302 = vstv %s301
    %v303 = vadd.f32 %v300, %v302
    %v304 = vxor.u32 %v303, 2147483648
    %v305 = vmul.f32 %v304, 1.442695
    %v306 = vpow.pop %v305
    %v307 = vadd.f32 %v306, 1.0
    %v308 = vrcp.pop %v307
    %v309 = vmul.f32 1.0, %v308
    %s310 = sld [smem:[#allocation2 + $0x3e]]
    %v311 = vstv %s310
    %v312 = vmul.f32 %v204, %v311
    %s313 = sld [smem:[#allocation2 + $0x3f]]
    %v314 = vstv %s313
    %v315 = vmul.f32 %v215, %v314
    %v316 = vadd.f32 %v312, %v315
    %s317 = sld [smem:[#allocation2 + $0x40]]
    %v318 = vstv %s317
    %v319 = vmul.f32 %v226, %v318
    %v320 = vadd.f32 %v316, %v319
    %s321 = sld [smem:[#allocation2 + $0x41]]
    %v322 = vstv %s321
    %v323 = vmul.f32 %v237, %v322
    %v324 = vadd.f32 %v320, %v323
    %s325 = sld [smem:[#allocation2 + $0x4d]]
    %v326 = vstv %s325
    %v327 = vadd.f32 %v324, %v326
    %v328 = vxor.u32 %v327, 2147483648
    %v329 = vmul.f32 %v328, 1.442695
    %v330 = vpow.pop %v329
    %v331 = vadd.f32 %v330, 1.0
    %v332 = vrcp.pop %v331
    %v333 = vmul.f32 1.0, %v332
    %s334 = sld [smem:[#allocation2 + $0x42]]
    %v335 = vstv %s334
    %v336 = vmul.f32 %v204, %v335
    %s337 = sld [smem:[#allocation2 + $0x43]]
    %v338 = vstv %s337
    %v339 = vmul.f32 %v215, %v338
    %v340 = vadd.f32 %v336, %v339
    %s341 = sld [smem:[#allocation2 + $0x44]]
    %v342 = vstv %s341
    %v343 = vmul.f32 %v226, %v342
    %v344 = vadd.f32 %v340, %v343
    %s345 = sld [smem:[#allocation2 + $0x45]]
    %v346 = vstv %s345
    %v347 = vmul.f32 %v237, %v346
    %v348 = vadd.f32 %v344, %v347
    %s349 = sld [smem:[#allocation2 + $0x4e]]
    %v350 = vstv %s349
    %v351 = vadd.f32 %v348, %v350
    %v352 = vxor.u32 %v351, 2147483648
    %v353 = vmul.f32 %v352, 1.442695
    %v354 = vpow.pop %v353
    %v355 = vadd.f32 %v354, 1.0
    %v356 = vrcp.pop %v355
    %v357 = vmul.f32 1.0, %v356
    %s358 = sld [smem:[#allocation2 + $0x46]]
    %v359 = vstv %s358
    %v360 = vmul.f32 %v204, %v359
    %s361 = sld [smem:[#allocation2 + $0x47]]
    %v362 = vstv %s361
    %v363 = vmul.f32 %v215, %v362
    %v364 = vadd.f32 %v360, %v363
    %s365 = sld [smem:[#allocation2 + $0x48]]
    %v366 = vstv %s365
    %v367 = vmul.f32 %v226, %v366
    %v368 = vadd.f32 %v364, %v367
    %s369 = sld [smem:[#allocation2 + $0x49]]
    %v370 = vstv %s369
    %v371 = vmul.f32 %v237, %v370
    %v372 = vadd.f32 %v368, %v371
    %s373 = sld [smem:[#allocation2 + $0x4f]]
    %v374 = vstv %s373
    %v375 = vadd.f32 %v372, %v374
    %v376 = vxor.u32 %v375, 2147483648
    %v377 = vmul.f32 %v376, 1.442695
    %v378 = vpow.pop %v377
    %v379 = vadd.f32 %v378, 1.0
    %v380 = vrcp.pop %v379
    %v381 = vmul.f32 1.0, %v380
    %382 = vst [vmem:[#allocation7] sm:$0xff] %v261
    %s383 = scalar_lea.vmem [#allocation7], 8
    %384 = vst [vmem:[%s383] sm:$0xff] %v285
    %s385 = scalar_lea.vmem [#allocation7], 16
    %386 = vst [vmem:[%s385] sm:$0xff] %v309
    %s387 = scalar_lea.vmem [#allocation7], 24
    %388 = vst [vmem:[%s387] sm:$0xff] %v333
    %s389 = scalar_lea.vmem [#allocation7], 32
    %390 = vst [vmem:[%s389] sm:$0xff] %v357
    %s391 = scalar_lea.vmem [#allocation7], 40
    %392 = vst [vmem:[%s391] sm:$0xff] %v381
    // Predicated region
    $region18: #{tpu_custom_call.1} parent=1 // pred_check
      _
    $region19: #{tpu_custom_call.1} parent=1 // pred_check_branch
      %394 = sbr.rel (0) target = $region21
    $region20: #{tpu_custom_call.1} parent=1 // pred_region
      %s396 = ssub.s32 768, 768
      %397 = vsyncadd [#allocation4], %s396
      %s398 = sshll.u32 [#allocation7], 4
      %s399 = int_to_ptr.vmem [resolvable:$true] %s398
      %404 = dma.vmem_to_hbm [thread:$0]  %s399, 768, %s2, [#allocation4], 128, 128, 8
    $region21: #{tpu_custom_call.1} parent=1 // pred_fallthru
      _
    // Predicated region
    $region22: #{tpu_custom_call.1} parent=1 // pred_check
      _
    $region23: #{tpu_custom_call.1} parent=1 // pred_check_branch
      %406 = sbr.rel (0) target = $region25
    $region24: #{tpu_custom_call.1} parent=1 // pred_region
      %407 = dma.done [#allocation4], 768
    $region25: #{tpu_custom_call.1} parent=1 // pred_fallthru
      _
    %408 = vsyncpa [#allocation3], 1
    %409 = vsyncpa [#allocation4], 1
    %410 = vsyncpa [#allocation5], 1

</llo_original>
